<compile_context>
chip_gen: v7x
topology: tpu7x:2x2x1
jax: 0.10.0
libtpu: 0.0.40
codegen_flags: <defaults>
</compile_context>

<pallas_src>
import functools

import jax
import jax.numpy as jnp
from jax import lax
from jax.experimental import pallas as pl
from jax.experimental.pallas import tpu as pltpu

LANE = 128
CHUNK_ROWS = 512                       # in-kernel accumulation chunk (256 KiB f32)
TARGET_BLOCK_BYTES = 4 * 1024 * 1024   # per-input HBM->VMEM block budget
SINGLE_BLOCK_MAX_ROWS = 8192           # gridless whole-slab reduction below this


def _raw_loss(y_pred, y_true):
    # TODO(synk): Loss.forward_no_reduction is abstract in the base class;
    # squared error is a concrete elementwise stand-in.  The reduction
    # machinery below is loss-agnostic: swap this function to change the loss.
    d = y_pred - y_true
    return d * d


def _cdiv(a, b):
    return -(-a // b)


@functools.lru_cache(maxsize=None)
def _num_tensorcores():
    """Best-effort TensorCores-per-device count (v7x / megacore -> 2)."""
    try:
        info = pltpu.get_tpu_info()
        for name in ("num_cores", "core_count", "num_tensorcores",
                     "tensorcore_count", "num_tensor_cores"):
            v = getattr(info, name, None)
            if isinstance(v, int) and v > 0:
                return v
    except Exception:
        pass
    try:
        kind = jax.devices()[0].device_kind.lower()
        if ("v7" in kind) or ("v4" in kind) or ("v5p" in kind) or ("v5 p" in kind):
            return 2
    except Exception:
        pass
    return 1


@functools.lru_cache(maxsize=None)
def _vmem_limit_bytes():
    """Explicit VMEM budget: above v5e's 16 MiB scoped default, below v7x's 64 MiB."""
    cap = None
    try:
        cap = int(pltpu.get_tpu_info().vmem_capacity_bytes)
    except Exception:
        cap = None
    if not cap or cap <= 0:
        cap = 64 * 1024 * 1024
    return max(32 * 1024 * 1024, min((cap * 3) // 4, 64 * 1024 * 1024))


def _compute_dtype(dtype):
    dtype = jnp.dtype(dtype)
    if jnp.issubdtype(dtype, jnp.floating) and dtype.itemsize >= 2:
        return dtype
    # int8 / fp8 / integer inputs: upcast so the squared term does not overflow.
    return jnp.dtype(jnp.float32)


def _max_block_rows(dtype, block_bytes):
    itemsize = jnp.dtype(dtype).itemsize
    br = (block_bytes // (LANE * itemsize) // CHUNK_ROWS) * CHUNK_ROWS
    return max(CHUNK_ROWS, br)


def _to_slab(x):
    """Flatten to a lane-dense (rows, 128) slab (zero-copy when n % 128 == 0)."""
    n = x.size
    rows = _cdiv(n, LANE)
    flat = x.reshape(-1)
    if rows * LANE != n:
        # TODO(synk): lane-ragged sizes pay one zero-padded copy (only to the
        # next 128 multiple, not to a block multiple); zero padding contributes
        # 0 to the squared-error reduction, so the result stays exact.
        flat = jnp.pad(flat, (0, rows * LANE - n))
    return flat.reshape(rows, LANE), rows


# --------------------------- 'none' reduction -------------------------------

def _loss_none(y_pred, y_true, block_bytes):
    slab_p, rows = _to_slab(y_pred)
    slab_t, _ = _to_slab(y_true)
    cdt = _compute_dtype(y_pred.dtype)
    itemsize = jnp.dtype(y_pred.dtype).itemsize

    def kernel(yp_ref, yt_ref, out_ref):
        raw = _raw_loss(yp_ref[...].astype(cdt), yt_ref[...].astype(cdt))
        out_ref[...] = raw.astype(out_ref.dtype)

    max_br = _max_block_rows(y_pred.dtype, block_bytes)
    br = rows if rows <= max_br else max_br        # full-dim block or 512-multiple
    nblocks = _cdiv(rows, br)

    return pl.pallas_call(
        kernel,
        out_shape=jax.ShapeDtypeStruct((rows, LANE), y_pred.dtype),
        grid=(nblocks,),
        in_specs=[pl.BlockSpec((br, LANE), lambda i: (i, 0)),
                  pl.BlockSpec((br, LANE), lambda i: (i, 0))],
        out_specs=pl.BlockSpec((br, LANE), lambda i: (i, 0)),
        compiler_params=pltpu.CompilerParams(
            dimension_semantics=("parallel",),
            vmem_limit_bytes=_vmem_limit_bytes()),
        cost_estimate=pl.CostEstimate(
            flops=2 * y_pred.size, transcendentals=0,
            bytes_accessed=3 * y_pred.size * itemsize),
    )(slab_p, slab_t)


# ------------------------- 'mean' / 'sum' reduction --------------------------

def _loss_reduce(y_pred, y_true, reduction, block_bytes, force_cores):
    n = y_pred.size
    slab_p, rows = _to_slab(y_pred)
    slab_t, _ = _to_slab(y_true)
    itemsize = jnp.dtype(y_pred.dtype).itemsize
    scale = (1.0 / n) if reduction == "mean" else 1.0
    vmem_limit = _vmem_limit_bytes()
    cost = pl.CostEstimate(flops=3 * n, transcendentals=0,
                           bytes_accessed=2 * n * itemsize)

    max_br = _max_block_rows(y_pred.dtype, block_bytes)
    single_max = min(max_br, SINGLE_BLOCK_MAX_ROWS)

    if rows <= single_max:
        # Whole-slab, gridless: elementwise loss + cross-lane reduce + 1/n scale
        # fused in a single invocation; padded lanes are zeros and contribute 0.
        def kernel(yp_ref, yt_ref, out_ref):
            raw = _raw_loss(yp_ref[...].astype(jnp.float32),
                            yt_ref[...].astype(jnp.float32))
            out_ref[...] = jnp.full((1, 1), jnp.sum(raw) * scale, jnp.float32)

        out = pl.pallas_call(
            kernel,
            out_shape=jax.ShapeDtypeStruct((1, 1), jnp.float32),
            compiler_params=pltpu.CompilerParams(vmem_limit_bytes=vmem_limit),
            cost_estimate=cost,
        )(slab_p, slab_t)
        return out[0, 0]

    # ---- multi-block streaming path ----
    br = min(max_br, (rows // CHUNK_ROWS) * CHUNK_ROWS)   # CHUNK multiple, <= rows
    nblocks = _cdiv(rows, br)
    ncores = force_cores if force_cores else _num_tensorcores()
    ncores = 2 if (ncores >= 2 and nblocks >= 2) else 1
    spc = _cdiv(nblocks, ncores)                 # steps per core (>=1 real block each)
    needs_mask = (rows % br != 0) or (ncores * spc != nblocks)
    n_chunks = br // CHUNK_ROWS

    def kernel(yp_ref, yt_ref, out_ref):
        core = pl.program_id(0)
        step = pl.program_id(1)

        @pl.when(step == 0)
        def _():
            out_ref[...] = jnp.zeros_like(out_ref)

        # Logical (unclamped) row offset of this block; used only for masking.
        row_base = (core * spc + step) * br

        def chunk_body(j, acc):
            r0 = pl.multiple_of(j * CHUNK_ROWS, CHUNK_ROWS)
            a = yp_ref[pl.ds(r0, CHUNK_ROWS), :].astype(jnp.float32)
            b = yt_ref[pl.ds(r0, CHUNK_ROWS), :].astype(jnp.float32)
            raw = _raw_loss(a, b)
            if needs_mask:
                rid = row_base + r0 + lax.broadcasted_iota(
                    jnp.int32, (CHUNK_ROWS, 1), 0)
                raw = jnp.where(rid < rows, raw, 0.0)
            # Sublane-group partial reduce: (512,128) -> (64,8,128) -> (8,128).
            return acc + raw.reshape(CHUNK_ROWS // 8, 8, LANE).sum(axis=0)

        out_ref[...] += lax.fori_loop(
            0, n_chunks, chunk_body, jnp.zeros((8, LANE), jnp.float32))

        # Fused finalization: one cross-lane reduce + 1/n scale per core slice.
        @pl.when(step == spc - 1)
        def _():
            s = jnp.sum(out_ref[...]) * scale
            out_ref[...] = jnp.full((8, LANE), s, jnp.float32)

    def in_map(c, i):
        # Clamp phantom steps (odd block count under the 2-core split) to the
        # last real block; their contribution is masked to zero in-kernel.
        return (jnp.minimum(c * spc + i, nblocks - 1), 0)

    parts = pl.pallas_call(
        kernel,
        out_shape=jax.ShapeDtypeStruct((8 * ncores, LANE), jnp.float32),
        grid=(ncores, spc),
        in_specs=[pl.BlockSpec((br, LANE), in_map),
                  pl.BlockSpec((br, LANE), in_map)],
        out_specs=pl.BlockSpec((8, LANE), lambda c, i: (c, 0)),
        compiler_params=pltpu.CompilerParams(
            dimension_semantics=("parallel", "arbitrary"),
            vmem_limit_bytes=vmem_limit),
        cost_estimate=cost,
    )(slab_p, slab_t)

    total = parts[0, 0]
    for c in range(1, ncores):
        total = total + parts[8 * c, 0]
    return total


# --------------------------------- wrapper -----------------------------------

def loss_forward(y_pred, y_true, reduction="mean", *,
                 block_bytes=TARGET_BLOCK_BYTES, force_cores=None):
    if reduction not in ("none", "mean", "sum"):
        raise ValueError(f'invalid reduction "{reduction}"')
    assert y_pred.shape == y_true.shape and y_pred.dtype == y_true.dtype
    n = y_pred.size

    if reduction == "none":
        out = _loss_none(y_pred, y_true, block_bytes)
        flat = out.reshape(-1)
        if flat.shape[0] != n:
            flat = flat[:n]
        return flat.reshape(y_pred.shape)

    total = _loss_reduce(y_pred, y_true, reduction, block_bytes, force_cores)
    # Accumulation is f32; the reduced loss carries the input dtype (PyTorch).
    return total.astype(y_pred.dtype)


if __name__ == "__main__":
    key = jax.random.PRNGKey(0)
    k1, k2, k3, k4, k5, k6 = jax.random.split(key, 6)

    # 1) canonical small NCHW case (lane-aligned -> zero-copy, single block)
    shape = (2, 4, 16, 16)
    yp = jax.random.normal(k1, shape, dtype=jnp.float32)
    yt = jax.random.normal(k2, shape, dtype=jnp.float32)
    ref = (yp - yt) ** 2
    out_none = jax.block_until_ready(loss_forward(yp, yt, "none"))
    out_sum = jax.block_until_ready(loss_forward(yp, yt, "sum"))
    out_mean = jax.block_until_ready(loss_forward(yp, yt, "mean"))
    assert out_none.shape == shape and out_none.dtype == yp.dtype
    assert jnp.allclose(out_none, ref, atol=1e-5)
    assert jnp.allclose(out_sum, ref.sum(), rtol=1e-5)
    assert jnp.allclose(out_mean, ref.mean(), rtol=1e-5)

    # 2) ragged shape (exercises the lane-padded path)
    rshape = (2, 3, 7, 5)
    rp = jax.random.normal(k3, rshape, dtype=jnp.float32)
    rt = jax.random.normal(k4, rshape, dtype=jnp.float32)
    rref = (rp - rt) ** 2
    assert jnp.allclose(jax.block_until_ready(loss_forward(rp, rt, "none")),
                        rref, atol=1e-5)
    assert jnp.allclose(jax.block_until_ready(loss_forward(rp, rt, "mean")),
                        rref.mean(), rtol=1e-5)

    # 3) multi-block streaming path with a forced 2-slice split, ragged last
    #    block and a masked phantom step (small block_bytes so the test stays
    #    tiny while exercising the production code path).
    bshape = (2, 4, 144, 128)            # 147456 elems -> 1152 rows -> 3 blocks of 512
    bp = jax.random.normal(k5, bshape, dtype=jnp.float32)
    bt = jax.random.normal(k6, bshape, dtype=jnp.float32)
    bref = (bp - bt) ** 2
    small = CHUNK_ROWS * LANE * 4        # 256 KiB blocks
    bsum = jax.block_until_ready(
        loss_forward(bp, bt, "sum", block_bytes=small, force_cores=2))
    bmean = jax.block_until_ready(
        loss_forward(bp, bt, "mean", block_bytes=small, force_cores=2))
    assert jnp.allclose(bsum, bref.sum(), rtol=1e-4)
    assert jnp.allclose(bmean, bref.mean(), rtol=1e-4)
    # default (auto-detected) configuration on the same tensor
    assert jnp.allclose(jax.block_until_ready(loss_forward(bp, bt, "sum")),
                        bref.sum(), rtol=1e-4)

    # 4) bf16 inputs (f32 accumulation, bf16 result)
    hp = yp.astype(jnp.bfloat16)
    ht = yt.astype(jnp.bfloat16)
    href = (hp.astype(jnp.float32) - ht.astype(jnp.float32)) ** 2
    hmean = jax.block_until_ready(loss_forward(hp, ht, "mean"))
    assert jnp.allclose(jnp.float32(hmean), href.mean(), rtol=1e-2)

    print("KERNEL_OK")
</pallas_src>

<mosaic_0001>
module attributes {stable_mosaic.version = 11 : i64} {
  func.func @kernel(%arg0: i32, %arg1: memref<16x128xf32, #tpu.memory_space<vmem>>, %arg2: memref<16x128xf32, #tpu.memory_space<vmem>>, %arg3: memref<16x128xf32, #tpu.memory_space<vmem>>) attributes {dimension_semantics = [#tpu.dimension_semantics<parallel>], iteration_bounds = array<i64: 1>, scalar_prefetch = 0 : i64, scratch_operands = 0 : i64, tpu.core_type = #tpu.core_type<tc>, window_params = [{transform_indices = @transform_0, window_bounds = array<i64: 16, 128>}, {transform_indices = @transform_1, window_bounds = array<i64: 16, 128>}, {transform_indices = @transform_2, window_bounds = array<i64: 16, 128>}]} {
    %c0 = arith.constant 0 : index
    %c0_0 = arith.constant 0 : index
    %0 = vector.load %arg1[%c0, %c0_0] : memref<16x128xf32, #tpu.memory_space<vmem>>, vector<16x128xf32>
    %c0_1 = arith.constant 0 : index
    %c0_2 = arith.constant 0 : index
    %1 = vector.load %arg2[%c0_1, %c0_2] : memref<16x128xf32, #tpu.memory_space<vmem>>, vector<16x128xf32>
    %2 = arith.subf %0, %1 : vector<16x128xf32>
    %3 = arith.mulf %2, %2 : vector<16x128xf32>
    %c0_3 = arith.constant 0 : index
    %c0_4 = arith.constant 0 : index
    %4 = vector.load %arg3[%c0_3, %c0_4] : memref<16x128xf32, #tpu.memory_space<vmem>>, vector<16x128xf32>
    tpu.vector_store %arg3[%c0_3, %c0_4], %3 {strides = array<i32>} : memref<16x128xf32, #tpu.memory_space<vmem>>, vector<16x128xf32>,
    return
  }
  func.func @transform_0(%arg0: i32) -> (i32, i32) {
    %c0_i32 = arith.constant 0 : i32
    %c0_i32_0 = arith.constant 0 : i32
    return %arg0, %c0_i32 : i32, i32
  }
  func.func @transform_1(%arg0: i32) -> (i32, i32) {
    %c0_i32 = arith.constant 0 : i32
    %c0_i32_0 = arith.constant 0 : i32
    return %arg0, %c0_i32 : i32, i32
  }
  func.func @transform_2(%arg0: i32) -> (i32, i32) {
    %c0_i32 = arith.constant 0 : i32
    %c0_i32_0 = arith.constant 0 : i32
    return %arg0, %c0_i32 : i32, i32
  }
}

</mosaic_0001>

<llo_original>
// kernel: tpu_custom_call.1
$region0: #{tpu_custom_call.1}
  #allocation0 [shape = 'u32[]', space=smem, size = 0x4, offset = 0x4, fixed_abs, tag = 'smem constant byte address 0x4 - core index']
  #allocation1 [shape = 'u32[144,128]{1,0:T(1,128)}', space=vmem, size = 0x12000, scoped, tag = 'internal scratch']
  %s0 = inlined_call_operand.hbm [shape: f32[16,128], index: 0, kind: input, shape index: {}]
  %s1 = inlined_call_operand.hbm [shape: f32[16,128], index: 1, kind: input, shape index: {}]
  %s2 = inlined_call_operand.hbm [shape: f32[16,128], index: 2, kind: output, shape index: {}]
  %s3 = sld [smem:[#allocation0]]
  $region26: #{tpu_custom_call.1} parent=0
    _
  %s5 = ssub.s32 1, %s3
  %s6 = scalar_select 0, %s5, %s3
  $region1: #{tpu_custom_call.1} parent=0
    #allocation2 [shape = 'u8[8192]{0}', space=vmem, size = 0x2000, scoped, tag = 'input window, operand 0, single buffered']
    #allocation3 [shape = 's32[1]{0}', space=sflag, size = 0x4, scoped, tag = 'scoped memory for tpu_custom_call.1']
    #allocation4 [shape = 's32[1]{0}', space=sflag, size = 0x4, scoped, tag = 'scoped memory for tpu_custom_call.1']
    #allocation5 [shape = 'u8[8192]{0}', space=vmem, size = 0x2000, scoped, tag = 'input window, operand 1, single buffered']
    #allocation6 [shape = 's32[1]{0}', space=sflag, size = 0x4, scoped, tag = 'scoped memory for tpu_custom_call.1']
    #allocation7 [shape = 'u8[8192]{0}', space=vmem, size = 0x2000, scoped, tag = 'output window, operand 0, single buffered']
    %7 = vsyncpa [#allocation3], 0
    %8 = vsyncpa [#allocation6], 0
    %9 = vsyncpa [#allocation4], 0
    // Predicated region
    $region2: #{tpu_custom_call.1} parent=1 // pred_check
      _
    $region3: #{tpu_custom_call.1} parent=1 // pred_check_branch
      %11 = sbr.rel (0) target = $region5
    $region4: #{tpu_custom_call.1} parent=1 // pred_region
      %s13 = ssub.s32 256, 256
      %14 = vsyncadd [#allocation3], %s13
      %s15 = sshll.u32 [#allocation2], 4
      %s16 = int_to_ptr.vmem [resolvable:$true] %s15
      %21 = dma.hbm_to_vmem [thread:$0]  %s0, 256, %s16, [#allocation3], 128, 128, 8
    $region5: #{tpu_custom_call.1} parent=1 // pred_fallthru
      _
    // Predicated region
    $region6: #{tpu_custom_call.1} parent=1 // pred_check
      _
    $region7: #{tpu_custom_call.1} parent=1 // pred_check_branch
      %23 = sbr.rel (0) target = $region9
    $region8: #{tpu_custom_call.1} parent=1 // pred_region
      %s25 = ssub.s32 256, 256
      %26 = vsyncadd [#allocation6], %s25
      %s27 = sshll.u32 [#allocation5], 4
      %s28 = int_to_ptr.vmem [resolvable:$true] %s27
      %33 = dma.hbm_to_vmem [thread:$0]  %s1, 256, %s28, [#allocation6], 128, 128, 8
    $region9: #{tpu_custom_call.1} parent=1 // pred_fallthru
      _
    // Predicated region
    $region10: #{tpu_custom_call.1} parent=1 // pred_check
      _
    $region11: #{tpu_custom_call.1} parent=1 // pred_check_branch
      %35 = sbr.rel (0) target = $region13
    $region12: #{tpu_custom_call.1} parent=1 // pred_region
      %36 = dma.done [#allocation3], 256
    $region13: #{tpu_custom_call.1} parent=1 // pred_fallthru
      _
    // Predicated region
    $region14: #{tpu_custom_call.1} parent=1 // pred_check
      _
    $region15: #{tpu_custom_call.1} parent=1 // pred_check_branch
      %38 = sbr.rel (0) target = $region17
    $region16: #{tpu_custom_call.1} parent=1 // pred_region
      %39 = dma.done [#allocation6], 256
    $region17: #{tpu_custom_call.1} parent=1 // pred_fallthru
      _
    %v40 = vld [vmem:[#allocation2] sm:$0xff]
    %v41 = vld [vmem:[#allocation2 + $0x8] sm:$0xff]
    %v42 = vld [vmem:[#allocation5] sm:$0xff]
    %v43 = vld [vmem:[#allocation5 + $0x8] sm:$0xff]
    %v44 = vsub.f32 %v40, %v42
    %v45 = vsub.f32 %v41, %v43
    %v46 = vmul.f32 %v44, %v44
    %v47 = vmul.f32 %v45, %v45
    %48 = vst [vmem:[#allocation7] sm:$0xff] %v46
    %49 = vst [vmem:[#allocation7 + $0x8] sm:$0xff] %v47
    // Predicated region
    $region18: #{tpu_custom_call.1} parent=1 // pred_check
      _
    $region19: #{tpu_custom_call.1} parent=1 // pred_check_branch
      %51 = sbr.rel (0) target = $region21
    $region20: #{tpu_custom_call.1} parent=1 // pred_region
      %s53 = ssub.s32 256, 256
      %54 = vsyncadd [#allocation4], %s53
      %s55 = sshll.u32 [#allocation7], 4
      %s56 = int_to_ptr.vmem [resolvable:$true] %s55
      %61 = dma.vmem_to_hbm [thread:$0]  %s56, 256, %s2, [#allocation4], 128, 128, 8
    $region21: #{tpu_custom_call.1} parent=1 // pred_fallthru
      _
    // Predicated region
    $region22: #{tpu_custom_call.1} parent=1 // pred_check
      _
    $region23: #{tpu_custom_call.1} parent=1 // pred_check_branch
      %63 = sbr.rel (0) target = $region25
    $region24: #{tpu_custom_call.1} parent=1 // pred_region
      %64 = dma.done [#allocation4], 256
    $region25: #{tpu_custom_call.1} parent=1 // pred_fallthru
      _
    %65 = vsyncpa [#allocation3], 1
    %66 = vsyncpa [#allocation6], 1
    %67 = vsyncpa [#allocation4], 1

</llo_original>
